<compile_context>
chip_gen: v7x
topology: tpu7x:2x2x1
jax: 0.10.0
libtpu: 0.0.40
codegen_flags: <defaults>
</compile_context>

<pallas_src>
import jax
import jax.numpy as jnp
from jax.experimental import pallas as pl
from jax.experimental.pallas import tpu as pltpu


IN_FEATURES = 11
OUT_FEATURES = 15

# Above this many rows it is worth splitting a single-tile batch into >=2 grid
# steps so both v7x TensorCores get work (no-op on v5e/v6e).
_MEGACORE_SPLIT_MIN_ROWS = 2048


def _round_up(n, m):
    return ((n + m - 1) // m) * m


def _pick_tile(B, row_tile, align):
    """Full-extent block when small; split for megacore when one tile would
    hold everything; otherwise the configured (VMEM-budgeted) tile."""
    if B <= row_tile:
        if B >= _MEGACORE_SPLIT_MIN_ROWS:
            half = -(-B // 2)  # cdiv(B, 2)
            return min(row_tile, _round_up(half, align))
        return B  # full-extent blocks are always legal
    return row_tile


def _cost(B, dtype):
    itemsize = jnp.dtype(dtype).itemsize
    return pl.CostEstimate(
        flops=2 * B * IN_FEATURES * OUT_FEATURES,
        transcendentals=0,
        bytes_accessed=(B * IN_FEATURES + 2 * B * OUT_FEATURES
                        + IN_FEATURES * OUT_FEATURES + OUT_FEATURES) * itemsize,
    )


def _linear_add_relu_kernel(x_ref, wt_ref, b_ref, other_ref, o_ref):
    # x_ref:(TB,IN)  wt_ref:(IN,OUT) pre-transposed once in wrapper
    # b_ref:(1,OUT)  other_ref/o_ref:(TB,OUT)
    y = jnp.dot(x_ref[...], wt_ref[...], preferred_element_type=jnp.float32)
    y = y + b_ref[...] + other_ref[...]          # f32 epilogue
    o_ref[...] = jnp.maximum(y, 0.0).astype(o_ref.dtype)


def _linear_add_relu_kernel_fm(xT_ref, w_ref, b_ref, otherT_ref, oT_ref):
    # Lane-dense formulation: batch lives in lanes.
    # xT_ref:(IN,TB)  w_ref:(OUT,IN)  b_ref:(OUT,1)  otherT_ref/oT_ref:(OUT,TB)
    y = jnp.dot(w_ref[...], xT_ref[...], preferred_element_type=jnp.float32)
    y = y + b_ref[...] + otherT_ref[...]
    oT_ref[...] = jnp.maximum(y, 0.0).astype(oT_ref.dtype)


def model_forward(x1, weight, bias, other, *, row_tile=4096,
                  use_pallas=None, min_pallas_rows=1024):
    """Batch-major (PyTorch) layout: x1:(B,IN), weight:(OUT,IN), bias:(OUT,),
    other:(B,OUT) -> relu(x1 @ weight.T + bias + other) : (B,OUT)."""
    B, IN = x1.shape
    OUT = weight.shape[0]

    if use_pallas is None:
        use_pallas = B >= min_pallas_rows
    if not use_pallas:
        # Tiny batches: fixed pallas_call/pipeline setup dwarfs the <KB-scale
        # data movement; let XLA fuse the whole epilogue directly.
        return jnp.maximum(x1 @ weight.T + bias + other, 0.0).astype(x1.dtype)

    wt = weight.T                   # (IN,OUT): one-time ~660 B transpose
    b2 = bias.reshape(1, OUT)       # broadcast happens in-kernel

    TB = _pick_tile(B, row_tile, align=8)
    grid = (pl.cdiv(B, TB),)

    return pl.pallas_call(
        _linear_add_relu_kernel,
        out_shape=jax.ShapeDtypeStruct((B, OUT), x1.dtype),
        grid_spec=pltpu.PrefetchScalarGridSpec(
            num_scalar_prefetch=0,
            grid=grid,
            in_specs=[
                pl.BlockSpec((TB, IN), lambda i: (i, 0)),     # x rows (streamed)
                pl.BlockSpec((IN, OUT), lambda i: (0, 0)),    # weight, grid-resident
                pl.BlockSpec((1, OUT), lambda i: (0, 0)),     # bias, grid-resident
                pl.BlockSpec((TB, OUT), lambda i: (i, 0)),    # other rows (streamed)
            ],
            out_specs=pl.BlockSpec((TB, OUT), lambda i: (i, 0)),
        ),
        compiler_params=pltpu.CompilerParams(
            dimension_semantics=("parallel",),  # shard rows across TCs on v7x
        ),
        cost_estimate=_cost(B, x1.dtype),
    )(x1, wt, b2, other)


def model_forward_feature_major(x1T, weight, bias, otherT, *, col_tile=16384):
    """Lane-dense variant for callers that can supply feature-major data:
    x1T:(IN,B), otherT:(OUT,B) -> (OUT,B).  Batch sits in lanes, so stores are
    unmasked and VMEM blocks are ~8x smaller, letting the tile grow."""
    IN, B = x1T.shape
    OUT = weight.shape[0]
    b2 = bias.reshape(OUT, 1)

    TB = _pick_tile(B, col_tile, align=128)
    grid = (pl.cdiv(B, TB),)

    return pl.pallas_call(
        _linear_add_relu_kernel_fm,
        out_shape=jax.ShapeDtypeStruct((OUT, B), x1T.dtype),
        grid_spec=pltpu.PrefetchScalarGridSpec(
            num_scalar_prefetch=0,
            grid=grid,
            in_specs=[
                pl.BlockSpec((IN, TB), lambda i: (0, i)),     # xT cols (streamed)
                pl.BlockSpec((OUT, IN), lambda i: (0, 0)),    # weight, grid-resident
                pl.BlockSpec((OUT, 1), lambda i: (0, 0)),     # bias, grid-resident
                pl.BlockSpec((OUT, TB), lambda i: (0, i)),    # otherT cols (streamed)
            ],
            out_specs=pl.BlockSpec((OUT, TB), lambda i: (0, i)),
        ),
        compiler_params=pltpu.CompilerParams(
            dimension_semantics=("parallel",),
        ),
        cost_estimate=_cost(B, x1T.dtype),
    )(x1T, weight, b2, otherT)


def _reference(x1, weight, bias, other):
    return jnp.maximum(x1 @ weight.T + bias + other, 0.0)


if __name__ == "__main__":
    key = jax.random.PRNGKey(0)
    k1, k2, k3, k4, k5, k6 = jax.random.split(key, 6)

    IN, OUT = IN_FEATURES, OUT_FEATURES

    # Deterministic parameters (shapes from nn.Linear(11, 15, bias=True)).
    bound = 1.0 / (IN ** 0.5)
    weight = jax.random.uniform(k3, (OUT, IN), minval=-bound, maxval=bound,
                                dtype=jnp.float32)
    bias = jax.random.uniform(k4, (OUT,), minval=-bound, maxval=bound,
                              dtype=jnp.float32)

    # --- Case 1: module-spec shapes (B=4); force the Pallas path. ---
    B = 4
    x1 = jax.random.normal(k1, (B, IN), dtype=jnp.float32)
    other = jax.random.normal(k2, (B, OUT), dtype=jnp.float32)
    ref = _reference(x1, weight, bias, other)

    out = jax.block_until_ready(
        model_forward(x1, weight, bias, other, use_pallas=True))
    assert out.shape == (B, OUT)
    assert jnp.allclose(out, ref, atol=1e-5, rtol=1e-5)

    # Lane-dense (feature-major) variant on the same data.
    outT = jax.block_until_ready(
        model_forward_feature_major(x1.T, weight, bias, other.T))
    assert jnp.allclose(outT.T, ref, atol=1e-5, rtol=1e-5)

    # --- Case 2: multi-step grid with a partial trailing block (masked tail) ---
    B2 = 300
    x1b = jax.random.normal(k5, (B2, IN), dtype=jnp.float32)
    otherb = jax.random.normal(k6, (B2, OUT), dtype=jnp.float32)
    ref2 = _reference(x1b, weight, bias, otherb)

    out2 = jax.block_until_ready(
        model_forward(x1b, weight, bias, otherb, row_tile=128, use_pallas=True))
    assert jnp.allclose(out2, ref2, atol=1e-5, rtol=1e-5)

    out2T = jax.block_until_ready(
        model_forward_feature_major(x1b.T, weight, bias, otherb.T, col_tile=128))
    assert jnp.allclose(out2T.T, ref2, atol=1e-5, rtol=1e-5)

    print("KERNEL_OK")
</pallas_src>

<mosaic_0001>
module attributes {stable_mosaic.version = 11 : i64} {
  func.func @_linear_add_relu_kernel(%arg0: i32, %arg1: memref<4x11xf32, #tpu.memory_space<vmem>>, %arg2: memref<11x15xf32, #tpu.memory_space<vmem>>, %arg3: memref<1x15xf32, #tpu.memory_space<vmem>>, %arg4: memref<4x15xf32, #tpu.memory_space<vmem>>, %arg5: memref<4x15xf32, #tpu.memory_space<vmem>>) attributes {dimension_semantics = [#tpu.dimension_semantics<parallel>], iteration_bounds = array<i64: 1>, scalar_prefetch = 0 : i64, scratch_operands = 0 : i64, tpu.core_type = #tpu.core_type<tc>, window_params = [{transform_indices = @transform_0, window_bounds = array<i64: 4, 11>}, {pipeline_mode = #tpu.pipeline_mode<synchronous>, transform_indices = @transform_1, window_bounds = array<i64: 11, 15>}, {pipeline_mode = #tpu.pipeline_mode<synchronous>, transform_indices = @transform_2, window_bounds = array<i64: 1, 15>}, {transform_indices = @transform_3, window_bounds = array<i64: 4, 15>}, {transform_indices = @transform_4, window_bounds = array<i64: 4, 15>}]} {
    %c0 = arith.constant 0 : index
    %c0_0 = arith.constant 0 : index
    %0 = vector.load %arg1[%c0, %c0_0] : memref<4x11xf32, #tpu.memory_space<vmem>>, vector<4x11xf32>
    %c0_1 = arith.constant 0 : index
    %c0_2 = arith.constant 0 : index
    %1 = vector.load %arg2[%c0_1, %c0_2] : memref<11x15xf32, #tpu.memory_space<vmem>>, vector<11x15xf32>
    %cst = arith.constant dense<0.000000e+00> : vector<4x15xf32>
    %2 = tpu.matmul %0, %1, %cst {dimension_numbers = #tpu.dot_dimension_numbers<[1], [0], [0], [1], [0, 0, 1, 1], [], []>} : vector<4x11xf32>, vector<11x15xf32>, vector<4x15xf32> -> vector<4x15xf32>
    %c0_3 = arith.constant 0 : index
    %c0_4 = arith.constant 0 : index
    %3 = vector.load %arg3[%c0_3, %c0_4] : memref<1x15xf32, #tpu.memory_space<vmem>>, vector<1x15xf32>
    %4 = vector.broadcast %3 : vector<1x15xf32> to vector<4x15xf32>
    %5 = arith.addf %2, %4 : vector<4x15xf32>
    %c0_5 = arith.constant 0 : index
    %c0_6 = arith.constant 0 : index
    %6 = vector.load %arg4[%c0_5, %c0_6] : memref<4x15xf32, #tpu.memory_space<vmem>>, vector<4x15xf32>
    %7 = arith.addf %5, %6 : vector<4x15xf32>
    %cst_7 = arith.constant 0.000000e+00 : f32
    %8 = vector.broadcast %cst_7 : f32 to vector<4x15xf32>
    %9 = arith.maximumf %7, %8 : vector<4x15xf32>
    %c0_8 = arith.constant 0 : index
    %c0_9 = arith.constant 0 : index
    %10 = vector.load %arg5[%c0_8, %c0_9] : memref<4x15xf32, #tpu.memory_space<vmem>>, vector<4x15xf32>
    tpu.vector_store %arg5[%c0_8, %c0_9], %9 {strides = array<i32>} : memref<4x15xf32, #tpu.memory_space<vmem>>, vector<4x15xf32>,
    return
  }
  func.func @transform_0(%arg0: i32) -> (i32, i32) {
    %c0_i32 = arith.constant 0 : i32
    %c0_i32_0 = arith.constant 0 : i32
    return %arg0, %c0_i32 : i32, i32
  }
  func.func @transform_1(%arg0: i32) -> (i32, i32) {
    %c0_i32 = arith.constant 0 : i32
    %c0_i32_0 = arith.constant 0 : i32
    %c0_i32_1 = arith.constant 0 : i32
    return %c0_i32, %c0_i32_0 : i32, i32
  }
  func.func @transform_2(%arg0: i32) -> (i32, i32) {
    %c0_i32 = arith.constant 0 : i32
    %c0_i32_0 = arith.constant 0 : i32
    %c0_i32_1 = arith.constant 0 : i32
    return %c0_i32, %c0_i32_0 : i32, i32
  }
  func.func @transform_3(%arg0: i32) -> (i32, i32) {
    %c0_i32 = arith.constant 0 : i32
    %c0_i32_0 = arith.constant 0 : i32
    return %arg0, %c0_i32 : i32, i32
  }
  func.func @transform_4(%arg0: i32) -> (i32, i32) {
    %c0_i32 = arith.constant 0 : i32
    %c0_i32_0 = arith.constant 0 : i32
    return %arg0, %c0_i32 : i32, i32
  }
}

</mosaic_0001>

<llo_original>
// kernel: tpu_custom_call.1
$region0: #{tpu_custom_call.1}
  #allocation0 [shape = 'u32[]', space=smem, size = 0x4, offset = 0x4, fixed_abs, tag = 'smem constant byte address 0x4 - core index']
  #allocation1 [shape = 'u32[144,128]{1,0:T(1,128)}', space=vmem, size = 0x12000, scoped, tag = 'internal scratch']
  %s0 = inlined_call_operand.hbm [shape: f32[4,11], index: 0, kind: input, shape index: {}]
  %s1 = inlined_call_operand.hbm [shape: f32[11,15], index: 1, kind: input, shape index: {}]
  %s2 = inlined_call_operand.vmem [shape: f32[1,15], index: 2, kind: input, shape index: {}]
  %s3 = inlined_call_operand.vmem [shape: f32[4,15], index: 3, kind: input, shape index: {}]
  %s4 = inlined_call_operand.hbm [shape: f32[4,15], index: 4, kind: output, shape index: {}]
  %s5 = sld [smem:[#allocation0]]
  $region34: #{tpu_custom_call.1} parent=0
    _
  %s7 = ssub.s32 1, %s5
  %s8 = scalar_select 0, %s7, %s5
  $region1: #{tpu_custom_call.1} parent=0
    #allocation2 [shape = 'u8[2048]{0}', space=vmem, size = 0x800, scoped, tag = 'input window, operand 0, single buffered']
    #allocation3 [shape = 's32[1]{0}', space=sflag, size = 0x4, scoped, tag = 'scoped memory for tpu_custom_call.1']
    #allocation4 [shape = 's32[1]{0}', space=sflag, size = 0x4, scoped, tag = 'scoped memory for tpu_custom_call.1']
    #allocation5 [shape = 'u8[8192]{0}', space=vmem, size = 0x2000, scoped, tag = 'input window, operand 1, single buffered']
    #allocation6 [shape = 's32[1]{0}', space=sflag, size = 0x4, scoped, tag = 'scoped memory for tpu_custom_call.1']
    #allocation7 [shape = 'u8[2048]{0}', space=vmem, size = 0x800, scoped, tag = 'output window, operand 0, single buffered']
    %9 = vsyncpa [#allocation3], 0
    %10 = vsyncpa [#allocation6], 0
    %11 = vsyncpa [#allocation4], 0
    // Predicated region
    $region2: #{tpu_custom_call.1} parent=1 // pred_check
      _
    $region3: #{tpu_custom_call.1} parent=1 // pred_check_branch
      %13 = sbr.rel (0) target = $region5
    $region4: #{tpu_custom_call.1} parent=1 // pred_region
      %s15 = ssub.s32 64, 64
      %16 = vsyncadd [#allocation3], %s15
      %s18 = sshll.u32 [#allocation2], 4
      %s19 = int_to_ptr.vmem [resolvable:$true] %s18
      %21 = dma.hbm_to_vmem [thread:$0]  %s0, 64, %s19, [#allocation3]
    $region5: #{tpu_custom_call.1} parent=1 // pred_fallthru
      _
    // Predicated region
    $region6: #{tpu_custom_call.1} parent=1 // pred_check
      _
    $region7: #{tpu_custom_call.1} parent=1 // pred_check_branch
      %23 = sbr.rel (0) target = $region9
    $region8: #{tpu_custom_call.1} parent=1 // pred_region
      %s25 = ssub.s32 256, 256
      %26 = vsyncadd [#allocation6], %s25
      %s27 = sshll.u32 [#allocation5], 4
      %s28 = int_to_ptr.vmem [resolvable:$true] %s27
      %33 = dma.hbm_to_vmem [thread:$0]  %s1, 256, %s28, [#allocation6], 128, 128, 8
    $region9: #{tpu_custom_call.1} parent=1 // pred_fallthru
      _
    // Predicated region
    $region10: #{tpu_custom_call.1} parent=1 // pred_check
      _
    $region11: #{tpu_custom_call.1} parent=1 // pred_check_branch
      %35 = sbr.rel (0) target = $region13
    $region12: #{tpu_custom_call.1} parent=1 // pred_region
      _
    $region13: #{tpu_custom_call.1} parent=1 // pred_fallthru
      _
    // Predicated region
    $region14: #{tpu_custom_call.1} parent=1 // pred_check
      _
    $region15: #{tpu_custom_call.1} parent=1 // pred_check_branch
      %37 = sbr.rel (0) target = $region17
    $region16: #{tpu_custom_call.1} parent=1 // pred_region
      _
    $region17: #{tpu_custom_call.1} parent=1 // pred_fallthru
      _
    // Predicated region
    $region18: #{tpu_custom_call.1} parent=1 // pred_check
      _
    $region19: #{tpu_custom_call.1} parent=1 // pred_check_branch
      %39 = sbr.rel (0) target = $region21
    $region20: #{tpu_custom_call.1} parent=1 // pred_region
      %40 = dma.done [#allocation3], 64
    $region21: #{tpu_custom_call.1} parent=1 // pred_fallthru
      _
    // Predicated region
    $region22: #{tpu_custom_call.1} parent=1 // pred_check
      _
    $region23: #{tpu_custom_call.1} parent=1 // pred_check_branch
      %42 = sbr.rel (0) target = $region25
    $region24: #{tpu_custom_call.1} parent=1 // pred_region
      %43 = dma.done [#allocation6], 256
    $region25: #{tpu_custom_call.1} parent=1 // pred_fallthru
      _
    %v44 = vld [vmem:[#allocation2] sm:$0xf]
    %v45 = vld [vmem:[#allocation5] sm:$0xff]
    %v46 = vld [vmem:[#allocation5 + $0x8] sm:$0x7]
    %v47 = vld [vmem:[%s2] sm:$0x1]
    %v49 = vlaneseq
    %v50 = vshrl.u32 %v49, 7
    %v51 = vsub.s32 0, %v50
    %v52 = vrot.slane %v47, %v51
    %vm54 = vcmask 89088
    %v56 = vsel %vm54, %v44, 0
    %vm58 = vcmask 1042432
    %v60 = vsel %vm58, %v46, 0
    %62 = vmatprep.subr.mxu0 0.0
    %63 = vmatpush1.msra.mxu0 %v45
    %64 = vmatprep.subr.mxu0 0.0
    %65 = vmatpush1.msra.mxu0 %v60
    %66 = vmatprep.subr.mxu0 0.0
    %67 = vmatpush1.msra.mxu0 0.0
    %68 = vmatprep.subr.mxu0 0.0
    %69 = vmatpush1.msra.mxu0 0.0
    %70 = vmatprep.subr.mxu0 0.0
    %71 = vmatpush1.msra.mxu0 0.0
    %72 = vmatprep.subr.mxu0 0.0
    %73 = vmatpush1.msra.mxu0 0.0
    %74 = vmatprep.subr.mxu0 0.0
    %75 = vmatpush1.msra.mxu0 0.0
    %76 = vmatprep.subr.mxu0 0.0
    %77 = vmatpush1.msra.mxu0 0.0
    %78 = vmatprep.subr.mxu0 0.0
    %79 = vmatpush1.msra.mxu0 0.0
    %80 = vmatprep.subr.mxu0 0.0
    %81 = vmatpush1.msra.mxu0 0.0
    %82 = vmatprep.subr.mxu0 0.0
    %83 = vmatpush1.msra.mxu0 0.0
    %84 = vmatprep.subr.mxu0 0.0
    %85 = vmatpush1.msra.mxu0 0.0
    %86 = vmatprep.subr.mxu0 0.0
    %87 = vmatpush1.msra.mxu0 0.0
    %88 = vmatprep.subr.mxu0 0.0
    %89 = vmatpush1.msra.mxu0 0.0
    %90 = vmatprep.subr.mxu0 0.0
    %91 = vmatpush1.msra.mxu0 0.0
    %92 = vmatprep.subr.mxu0 0.0
    %93 = vmatpush1.msra.mxu0 0.0
    %94 = vmatprep.subr.mxu0 0.0
    %95 = vmatpush1.msra.mxu0 0.0
    %96 = vmatprep.subr.mxu0 0.0
    %97 = vmatpush1.msra.mxu0 0.0
    %98 = vmatprep.subr.mxu0 0.0
    %99 = vmatpush1.msra.mxu0 0.0
    %100 = vmatprep.subr.mxu0 0.0
    %101 = vmatpush1.msra.mxu0 0.0
    %102 = vmatprep.subr.mxu0 0.0
    %103 = vmatpush1.msra.mxu0 0.0
    %104 = vmatprep.subr.mxu0 0.0
    %105 = vmatpush1.msra.mxu0 0.0
    %106 = vmatprep.subr.mxu0 0.0
    %107 = vmatpush1.msra.mxu0 0.0
    %108 = vmatprep.subr.mxu0 0.0
    %109 = vmatpush1.msra.mxu0 0.0
    %110 = vmatprep.subr.mxu0 0.0
    %111 = vmatpush1.msra.mxu0 0.0
    %112 = vmatprep.subr.mxu0 0.0
    %113 = vmatpush1.msra.mxu0 0.0
    %114 = vmatprep.subr.mxu0 0.0
    %115 = vmatpush1.msra.mxu0 0.0
    %116 = vmatprep.subr.mxu0 0.0
    %117 = vmatpush1.msra.mxu0 0.0
    %118 = vmatprep.subr.mxu0 0.0
    %119 = vmatpush1.msra.mxu0 0.0
    %120 = vmatprep.subr.mxu0 0.0
    %121 = vmatpush1.msra.mxu0 0.0
    %122 = vmatprep.subr.mxu0 0.0
    %123 = vmatpush1.msra.mxu0 0.0
    %124 = vmatprep.subr.mxu0 0.0
    %125 = vmatpush1.msra.mxu0 0.0
    %126 = vmatprep.mubr.f32.mxu0 0.0
    %127 = vmatmul.mubr.f32.gmra.mrb[0].mxu0 %v56
    %v128 = vpop.f32.mrb[0].mxu0
    %v129 = vadd.f32 %v52, %v128
    %v130 = vpop.f32.mrb[0].mxu0
    %131 = vdwg.mxu0
    %v132 = vld [vmem:[%s3] sm:$0xf]
    %v133 = vadd.f32 %v129, %v132
    %v134 = vmax.f32 %v133, 0.0
    %vm135 = vcmask 117760
    %136 = vst.msk [vmem:[#allocation7] sm:$0xf] %vm135, %v134
    // Predicated region
    $region26: #{tpu_custom_call.1} parent=1 // pred_check
      _
    $region27: #{tpu_custom_call.1} parent=1 // pred_check_branch
      %138 = sbr.rel (0) target = $region29
    $region28: #{tpu_custom_call.1} parent=1 // pred_region
      %s140 = ssub.s32 64, 64
      %141 = vsyncadd [#allocation4], %s140
      %s143 = sshll.u32 [#allocation7], 4
      %s144 = int_to_ptr.vmem [resolvable:$true] %s143
      %146 = dma.vmem_to_hbm [thread:$0]  %s144, 64, %s4, [#allocation4]
    $region29: #{tpu_custom_call.1} parent=1 // pred_fallthru
      _
    // Predicated region
    $region30: #{tpu_custom_call.1} parent=1 // pred_check
      _
    $region31: #{tpu_custom_call.1} parent=1 // pred_check_branch
      %148 = sbr.rel (0) target = $region33
    $region32: #{tpu_custom_call.1} parent=1 // pred_region
      %149 = dma.done [#allocation4], 64
    $region33: #{tpu_custom_call.1} parent=1 // pred_fallthru
      _
    %150 = vsyncpa [#allocation3], 1
    %151 = vsyncpa [#allocation6], 1
    %152 = vsyncpa [#allocation4], 1

</llo_original>
